<compile_context>
chip_gen: v7x
topology: tpu7x:2x2x1
jax: 0.10.0
libtpu: 0.0.40
codegen_flags: <defaults>
</compile_context>

<pallas_src>
import functools

import jax
import jax.numpy as jnp
from jax import lax
from jax.experimental import pallas as pl
from jax.experimental.pallas import tpu as pltpu

_CLAMP_MIN = 1e-12
_CLAMP_MAX = 1.0e12


def _center_loss_kernel(
    x_ref,        # VMEM (TB, D)       x batch tile (native dtype, auto-pipelined)
    labels_ref,   # VMEM (TB, 1)       int32 label tile
    centers_ref,  # VMEM (C, D)        resident centers table (same block each step)
    out_ref,      # VMEM (1, 8, 128)   per-partition partial sum (scalar broadcast)
    acc_ref,      # SMEM (1,)          running sum over this partition's tiles
    *,
    batch_size: int,
    num_classes: int,
    tb: int,
    tiles_per_part: int,
):
    p = pl.program_id(0)   # partition (parallel across TensorCores on v7x)
    t = pl.program_id(1)   # batch tile within the partition (arbitrary / carried)

    @pl.when(t == 0)
    def _():
        acc_ref[0] = jnp.float32(0.0)

    xb = x_ref[...].astype(jnp.float32)            # (TB, D)
    cb_all = centers_ref[...].astype(jnp.float32)  # (C, D)
    lbl = labels_ref[...]                          # (TB, 1) int32

    # Gather centers[labels] as a one-hot matmul on the (otherwise idle) MXU.
    onehot = (lbl == lax.broadcasted_iota(jnp.int32, (tb, num_classes), 1)
              ).astype(jnp.float32)                                  # (TB, C)
    cb = jnp.dot(onehot, cb_all, preferred_element_type=jnp.float32)  # (TB, D)

    diff = xb - cb
    row_d = jnp.sum(diff * diff, axis=1, keepdims=True)   # (TB, 1)
    row_d = jnp.clip(row_d, _CLAMP_MIN, _CLAMP_MAX)

    tile_start = (p * tiles_per_part + t) * tb
    needs_mask = tile_start + tb > batch_size   # only tiles containing padding

    @pl.when(needs_mask)
    def _():
        ridx = tile_start + lax.broadcasted_iota(jnp.int32, (tb, 1), 0)
        valid = (ridx < batch_size).astype(jnp.float32)
        acc_ref[0] += jnp.sum(row_d * valid)

    @pl.when(jnp.logical_not(needs_mask))
    def _():
        acc_ref[0] += jnp.sum(row_d)

    @pl.when(t == tiles_per_part - 1)
    def _():
        out_ref[...] = jnp.full((1, 8, 128), acc_ref[0], dtype=jnp.float32)


def _round_up(n, m):
    return (n + m - 1) // m * m


def center_loss(x, centers, labels, *, tb: int = 256):
    """x: (B, D), centers: (C, D), labels: (B,) int -> scalar float32 loss."""
    labels = labels.astype(jnp.int32)
    batch_size, feat_dim = x.shape
    num_classes, c_dim = centers.shape
    assert c_dim == feat_dim

    # Sublane packing: 8 rows for 32-bit dtypes, 16 rows for 16-bit dtypes.
    sublane = 8 if jnp.dtype(x.dtype).itemsize >= 4 else 16
    tb = _round_up(max(sublane, min(tb, _round_up(batch_size, sublane))), sublane)

    n_tiles = pl.cdiv(batch_size, tb)
    num_parts = 2 if n_tiles >= 2 else 1        # 2 TCs on v7x; harmless elsewhere
    tiles_per_part = pl.cdiv(n_tiles, num_parts)
    padded_b = num_parts * tiles_per_part * tb

    if padded_b != batch_size:
        x = jnp.pad(x, ((0, padded_b - batch_size), (0, 0)))
        labels = jnp.pad(labels, (0, padded_b - batch_size))  # label 0: safe
    labels2d = labels.reshape(padded_b, 1)

    kernel = functools.partial(
        _center_loss_kernel,
        batch_size=batch_size,
        num_classes=num_classes,
        tb=tb,
        tiles_per_part=tiles_per_part,
    )

    # Explicit VMEM budget: double-buffered x / label tiles + resident centers
    # (double-buffered by the pipeliner) + tiny output blocks, with headroom.
    est = (2 * tb * feat_dim * jnp.dtype(x.dtype).itemsize
           + 2 * tb * 4
           + 2 * num_classes * feat_dim * jnp.dtype(centers.dtype).itemsize
           + 2 * num_parts * 8 * 128 * 4)
    vmem_limit = int(min(100 * 1024 * 1024, max(32 * 1024 * 1024, 2 * est)))

    tpp = tiles_per_part  # close over a plain python int in the index maps

    partials = pl.pallas_call(
        kernel,
        out_shape=jax.ShapeDtypeStruct((num_parts, 8, 128), jnp.float32),
        grid_spec=pltpu.PrefetchScalarGridSpec(
            num_scalar_prefetch=0,
            grid=(num_parts, tiles_per_part),
            in_specs=[
                # x: (TB, D) batch tile, double-buffered by the auto-pipeliner.
                pl.BlockSpec((tb, feat_dim), lambda p, t: (p * tpp + t, 0)),
                # labels: (TB, 1) int32 tile alongside x.
                pl.BlockSpec((tb, 1), lambda p, t: (p * tpp + t, 0)),
                # centers: full table, same block every step -> VMEM-resident.
                pl.BlockSpec((num_classes, feat_dim), lambda p, t: (0, 0)),
            ],
            # One (8,128)-aligned output block per partition (lane-dense, legal
            # tiling); written once on the partition's last tile.
            out_specs=pl.BlockSpec((1, 8, 128), lambda p, t: (p, 0, 0)),
            scratch_shapes=[pltpu.SMEM((1,), jnp.float32)],
        ),
        compiler_params=pltpu.CompilerParams(
            dimension_semantics=("parallel", "arbitrary"),
            vmem_limit_bytes=vmem_limit,
        ),
    )(x, labels2d, centers)

    total = jnp.sum(partials[:, 0, 0])
    # Clamp-after-mask: each of the B*(C-1) masked-out zeros clamps to 1e-12.
    const = jnp.float32(batch_size * (num_classes - 1) * _CLAMP_MIN)
    return (total + const) / jnp.float32(batch_size)


def center_loss_ref(x, centers, labels):
    """Pure-JAX reference mirroring the PyTorch forward exactly."""
    x = x.astype(jnp.float32)
    centers = centers.astype(jnp.float32)
    batch_size = x.shape[0]
    num_classes = centers.shape[0]
    distmat = (
        jnp.sum(x**2, axis=1, keepdims=True)
        + jnp.sum(centers**2, axis=1, keepdims=True).T
        - 2.0 * x @ centers.T
    )
    mask = (labels[:, None] == jnp.arange(num_classes)[None, :]).astype(jnp.float32)
    dist = jnp.clip(distmat * mask, _CLAMP_MIN, _CLAMP_MAX)
    return jnp.sum(dist) / batch_size


if __name__ == "__main__":
    batch_size = 24
    feat_dim = 128
    num_classes = 16

    key = jax.random.PRNGKey(0)
    kx, kc, kl = jax.random.split(key, 3)

    x = jax.random.normal(kx, (batch_size, feat_dim), dtype=jnp.float32)
    # nn.Parameter(torch.randn(num_classes, feat_dim)) analogue.
    centers = jax.random.normal(kc, (num_classes, feat_dim), dtype=jnp.float32)
    labels = jax.random.randint(kl, (batch_size,), 0, num_classes, dtype=jnp.int32)

    # tb=8 at this tiny size exercises multi-tile streaming, the two-partition
    # grid and the padded-tile masking path.
    loss = jax.block_until_ready(center_loss(x, centers, labels, tb=8))
    loss_ref = jax.block_until_ready(center_loss_ref(x, centers, labels))

    assert jnp.allclose(loss, loss_ref, rtol=1e-5, atol=1e-5), (loss, loss_ref)
    print("KERNEL_OK")
</pallas_src>

<mosaic_0001>
module attributes {stable_mosaic.version = 11 : i64} {
  func.func @_center_loss_kernel(%arg0: i32, %arg1: i32, %arg2: memref<8x128xf32, #tpu.memory_space<vmem>>, %arg3: memref<8x1xi32, #tpu.memory_space<vmem>>, %arg4: memref<16x128xf32, #tpu.memory_space<vmem>>, %arg5: memref<1x8x128xf32, #tpu.memory_space<vmem>>, %arg6: memref<1xf32, #tpu.memory_space<smem>>) attributes {dimension_semantics = [#tpu.dimension_semantics<parallel>, #tpu.dimension_semantics<arbitrary>], iteration_bounds = array<i64: 2, 2>, scalar_prefetch = 0 : i64, scratch_operands = 1 : i64, tpu.core_type = #tpu.core_type<tc>, window_params = [{transform_indices = @transform_0, window_bounds = array<i64: 8, 128>}, {transform_indices = @transform_1, window_bounds = array<i64: 8, 1>}, {pipeline_mode = #tpu.pipeline_mode<synchronous>, transform_indices = @transform_2, window_bounds = array<i64: 16, 128>}, {transform_indices = @transform_3, window_bounds = array<i64: 1, 8, 128>}]} {
    %c0_i32 = arith.constant 0 : i32
    %0 = arith.cmpi eq, %arg1, %c0_i32 : i32
    %1 = arith.extui %0 : i1 to i32
    %c0_i32_0 = arith.constant 0 : i32
    %2 = arith.cmpi ne, %1, %c0_i32_0 : i32
    scf.if %2 {
      %cst_13 = arith.constant 0.000000e+00 : f32
      %c0_14 = arith.constant 0 : index
      %33 = memref.load %arg6[%c0_14] : memref<1xf32, #tpu.memory_space<smem>>
      memref.store %cst_13, %arg6[%c0_14] : memref<1xf32, #tpu.memory_space<smem>>
    } else {
    }
    %c0 = arith.constant 0 : index
    %c0_1 = arith.constant 0 : index
    %3 = vector.load %arg2[%c0, %c0_1] : memref<8x128xf32, #tpu.memory_space<vmem>>, vector<8x128xf32>
    %c0_2 = arith.constant 0 : index
    %c0_3 = arith.constant 0 : index
    %4 = vector.load %arg4[%c0_2, %c0_3] : memref<16x128xf32, #tpu.memory_space<vmem>>, vector<16x128xf32>
    %c0_4 = arith.constant 0 : index
    %c0_5 = arith.constant 0 : index
    %5 = vector.load %arg3[%c0_4, %c0_5] : memref<8x1xi32, #tpu.memory_space<vmem>>, vector<8x1xi32>
    %6 = tpu.iota {dimensions = array<i32: 1>} : vector<8x16xi32>
    %7 = vector.broadcast %5 : vector<8x1xi32> to vector<8x16xi32>
    %8 = arith.cmpi eq, %7, %6 : vector<8x16xi32>
    %9 = arith.extui %8 : vector<8x16xi1> to vector<8x16xi32>
    %10 = arith.sitofp %9 : vector<8x16xi32> to vector<8x16xf32>
    %cst = arith.constant dense<0.000000e+00> : vector<8x128xf32>
    %11 = tpu.matmul %10, %4, %cst {dimension_numbers = #tpu.dot_dimension_numbers<[1], [0], [0], [1], [0, 0, 1, 1], [], []>} : vector<8x16xf32>, vector<16x128xf32>, vector<8x128xf32> -> vector<8x128xf32>
    %12 = arith.subf %3, %11 : vector<8x128xf32>
    %13 = arith.mulf %12, %12 : vector<8x128xf32>
    %cst_6 = arith.constant dense<0.000000e+00> : vector<8xf32>
    %14 = vector.multi_reduction <add>, %13, %cst_6 [1] : vector<8x128xf32> to vector<8xf32>
    %15 = vector.shape_cast %14 : vector<8xf32> to vector<8x1xf32>
    %cst_7 = arith.constant 9.99999996E-13 : f32
    %cst_8 = arith.constant 9.99999995E+11 : f32
    %16 = vector.broadcast %cst_7 : f32 to vector<8x1xf32>
    %17 = arith.maximumf %16, %15 : vector<8x1xf32>
    %18 = vector.broadcast %cst_8 : f32 to vector<8x1xf32>
    %19 = arith.minimumf %18, %17 : vector<8x1xf32>
    %c2_i32 = arith.constant 2 : i32
    %20 = arith.muli %arg0, %c2_i32 : i32
    %21 = arith.addi %20, %arg1 : i32
    %c8_i32 = arith.constant 8 : i32
    %22 = arith.muli %21, %c8_i32 : i32
    %c8_i32_9 = arith.constant 8 : i32
    %23 = arith.addi %22, %c8_i32_9 : i32
    %c24_i32 = arith.constant 24 : i32
    %24 = arith.cmpi sgt, %23, %c24_i32 : i32
    %25 = arith.extui %24 : i1 to i32
    %c0_i32_10 = arith.constant 0 : i32
    %26 = arith.cmpi ne, %25, %c0_i32_10 : i32
    scf.if %26 {
      %33 = tpu.iota {dimensions = array<i32: 0>} : vector<8x1xi32>
      %34 = vector.broadcast %22 : i32 to vector<8x1xi32>
      %35 = arith.addi %34, %33 : vector<8x1xi32>
      %c24_i32_13 = arith.constant 24 : i32
      %36 = vector.broadcast %c24_i32_13 : i32 to vector<8x1xi32>
      %37 = arith.cmpi slt, %35, %36 : vector<8x1xi32>
      %38 = arith.extui %37 : vector<8x1xi1> to vector<8x1xi32>
      %39 = arith.sitofp %38 : vector<8x1xi32> to vector<8x1xf32>
      %c0_14 = arith.constant 0 : index
      %40 = memref.load %arg6[%c0_14] : memref<1xf32, #tpu.memory_space<smem>>
      %41 = arith.mulf %19, %39 : vector<8x1xf32>
      %42 = vector.shape_cast %41 : vector<8x1xf32> to vector<1x8x1xf32>
      %cst_15 = arith.constant dense<0.000000e+00> : vector<1xf32>
      %43 = vector.multi_reduction <add>, %42, %cst_15 [1, 2] : vector<1x8x1xf32> to vector<1xf32>
      %44 = vector.shape_cast %43 : vector<1xf32> to vector<1x1x1xf32>
      %45 = vector.extract %44[0, 0, 0] : f32 from vector<1x1x1xf32>
      %46 = arith.addf %40, %45 : f32
      %c0_16 = arith.constant 0 : index
      %47 = memref.load %arg6[%c0_16] : memref<1xf32, #tpu.memory_space<smem>>
      memref.store %46, %arg6[%c0_16] : memref<1xf32, #tpu.memory_space<smem>>
    } else {
    }
    %true = arith.constant true
    %27 = arith.xori %24, %true : i1
    %28 = arith.extui %27 : i1 to i32
    %c0_i32_11 = arith.constant 0 : i32
    %29 = arith.cmpi ne, %28, %c0_i32_11 : i32
    scf.if %29 {
      %c0_13 = arith.constant 0 : index
      %33 = memref.load %arg6[%c0_13] : memref<1xf32, #tpu.memory_space<smem>>
      %34 = vector.shape_cast %19 : vector<8x1xf32> to vector<1x8x1xf32>
      %cst_14 = arith.constant dense<0.000000e+00> : vector<1xf32>
      %35 = vector.multi_reduction <add>, %34, %cst_14 [1, 2] : vector<1x8x1xf32> to vector<1xf32>
      %36 = vector.shape_cast %35 : vector<1xf32> to vector<1x1x1xf32>
      %37 = vector.extract %36[0, 0, 0] : f32 from vector<1x1x1xf32>
      %38 = arith.addf %33, %37 : f32
      %c0_15 = arith.constant 0 : index
      %39 = memref.load %arg6[%c0_15] : memref<1xf32, #tpu.memory_space<smem>>
      memref.store %38, %arg6[%c0_15] : memref<1xf32, #tpu.memory_space<smem>>
    } else {
    }
    %c1_i32 = arith.constant 1 : i32
    %30 = arith.cmpi eq, %arg1, %c1_i32 : i32
    %31 = arith.extui %30 : i1 to i32
    %c0_i32_12 = arith.constant 0 : i32
    %32 = arith.cmpi ne, %31, %c0_i32_12 : i32
    scf.if %32 {
      %c0_13 = arith.constant 0 : index
      %33 = memref.load %arg6[%c0_13] : memref<1xf32, #tpu.memory_space<smem>>
      %34 = vector.broadcast %33 : f32 to vector<1x8x128xf32>
      %c0_14 = arith.constant 0 : index
      %c0_15 = arith.constant 0 : index
      %c0_16 = arith.constant 0 : index
      %35 = vector.load %arg5[%c0_14, %c0_15, %c0_16] : memref<1x8x128xf32, #tpu.memory_space<vmem>>, vector<1x8x128xf32>
      tpu.vector_store %arg5[%c0_14, %c0_15, %c0_16], %34 {strides = array<i32>} : memref<1x8x128xf32, #tpu.memory_space<vmem>>, vector<1x8x128xf32>,
    } else {
    }
    return
  }
  func.func @transform_0(%arg0: i32, %arg1: i32) -> (i32, i32) {
    %c2_i32 = arith.constant 2 : i32
    %0 = arith.muli %arg0, %c2_i32 : i32
    %1 = arith.addi %0, %arg1 : i32
    %c0_i32 = arith.constant 0 : i32
    %c0_i32_0 = arith.constant 0 : i32
    return %1, %c0_i32 : i32, i32
  }
  func.func @transform_1(%arg0: i32, %arg1: i32) -> (i32, i32) {
    %c2_i32 = arith.constant 2 : i32
    %0 = arith.muli %arg0, %c2_i32 : i32
    %1 = arith.addi %0, %arg1 : i32
    %c0_i32 = arith.constant 0 : i32
    %c0_i32_0 = arith.constant 0 : i32
    return %1, %c0_i32 : i32, i32
  }
  func.func @transform_2(%arg0: i32, %arg1: i32) -> (i32, i32) {
    %c0_i32 = arith.constant 0 : i32
    %c0_i32_0 = arith.constant 0 : i32
    %c0_i32_1 = arith.constant 0 : i32
    return %c0_i32, %c0_i32_0 : i32, i32
  }
  func.func @transform_3(%arg0: i32, %arg1: i32) -> (i32, i32, i32) {
    %c0_i32 = arith.constant 0 : i32
    %c0_i32_0 = arith.constant 0 : i32
    %c0_i32_1 = arith.constant 0 : i32
    return %arg0, %c0_i32, %c0_i32_0 : i32, i32, i32
  }
}

</mosaic_0001>

<llo_original>
// kernel: tpu_custom_call.1
$region0: #{tpu_custom_call.1}
  #allocation0 [shape = 'u32[]', space=smem, size = 0x4, offset = 0x4, fixed_abs, tag = 'smem constant byte address 0x4 - core index']
  #allocation1 [shape = 'u32[144,128]{1,0:T(1,128)}', space=vmem, size = 0x12000, scoped, tag = 'internal scratch']
  #allocation2 [shape = 'f32[1]{0:T(128)}', space=smem, size = 0x200, scoped, tag = 'scratch operand']
  %s0 = inlined_call_operand.vmem [shape: f32[32,128], index: 0, kind: input, shape index: {}]
  %s1 = inlined_call_operand.vmem [shape: s32[32,1], index: 1, kind: input, shape index: {}]
  %s2 = inlined_call_operand.hbm [shape: f32[16,128], index: 2, kind: input, shape index: {}]
  %s3 = inlined_call_operand.hbm [shape: f32[2,8,128], index: 3, kind: output, shape index: {}]
  %s4 = sld [smem:[#allocation0]]
  $region65: #{tpu_custom_call.1} parent=0
    _
  %s6 = ssub.s32 1, %s4
  %s7 = scalar_select 0, %s6, %s4
  $region1: #{tpu_custom_call.1} parent=0
    #allocation3 [shape = 'u8[8192]{0}', space=vmem, size = 0x2000, scoped, tag = 'input window, operand 2, single buffered']
    #allocation4 [shape = 's32[2]{0}', space=sflag, size = 0x8, scoped, tag = 'scoped memory for tpu_custom_call.1']
    #allocation5 [shape = 's32[2]{0}', space=sflag, size = 0x8, scoped, tag = 'scoped memory for tpu_custom_call.1']
    #allocation6 [shape = 'u8[8192]{0}', space=vmem, size = 0x2000, scoped, tag = 'output window, operand 0']
    %8 = vsyncpa [#allocation4], 0
    %9 = vsyncpa [#allocation5], 0
    %s10 = scalar_lea.sflag [#allocation5], 1
    %11 = vsyncpa %s10, 0
    loop: start=0, step=1, limit=6
    $region2: #{tpu_custom_call.1} parent=1 // loop_pre_header
      _
    $region3: #{tpu_custom_call.1} parent=1 // loop_header
      %s13 = sphi 0, %s17
      %p14 = scmp.ge.s32.totalorder %s13, 6
      %s20 = sphi 0, %s32
      %s21 = sphi 0, %s28
      %s22 = sphi 0, %s20
      %s23 = sphi 0, %s21
      %s24 = sphi 0, %s22
      %s25 = sphi 0, %s23
      %s39 = sphi 0, %s41
      %s42 = sphi 0, %s39
      %s43 = sphi 0, %s42
      %s59 = sphi 0, %s43
      %s69 = sphi 0, %s71
      %s72 = sphi 0, %s69
      %s73 = sphi 0, %s72
      %s89 = sphi 0, %s73
      %s93 = sphi 0, %s93
      %s95 = sphi 0, %s93
      %s96 = sphi 0, %s95
      %s110 = sphi 0, %s96
      %s116 = sphi 0, %s118
      %s119 = sphi 0, %s116
      %s120 = sphi 0, %s119
      %s136 = sphi 0, %s120
    $region4: #{tpu_custom_call.1} parent=1 // loop_header_branch
      %16 = sbr.rel (%p14) target = $region8
    $region5: #{tpu_custom_call.1} parent=1 // loop_body
      %s18 = ssub.s32 %s13, 1
      %s19 = ssub.s32 %s13, 2
      %s26 = sadd.s32 1, %s21
      %p27 = scmp.ge.s32.totalorder %s26, 2
      %s28 = scalar_select %p27, 0, %s26
      %s29 = sadd.s32 1, %s20
      %s30 = scalar_select %p27, %s29, %s20
      %p31 = scmp.ge.s32.totalorder %s30, 2
      %s32 = scalar_select %p31, 0, %s30
      %s33 = smul.u32 %s20, 2
      %s34 = sadd.s32 %s33, %s21
      %s35 = smul.u32 %s32, 2
      %s36 = sadd.s32 %s35, %s28
      %s37 = ssub.s32 %s34, %s36
      %p38 = scmp.eq.s32.totalorder %s37, 0
      %s40 = sadd.s32 %s39, 1
      %s41 = scalar_select %p38, %s39, %s40
      %p44 = pneg %p38
      %p45 = scmp.eq.s32.totalorder %s13, 3
      %p46 = por %p44, %p45
      %p47 = scmp.ne.s32.totalorder %s39, %s42
      %p48 = scmp.eq.s32.totalorder %s13, 0
      %p49 = por %p47, %p48
      %p50 = scmp.ne.s32.totalorder %s39, %s42
      %p51 = scmp.eq.s32.totalorder %s18, 3
      %p52 = por %p50, %p51
      %p53 = scmp.ne.s32.totalorder %s42, %s43
      %p54 = scmp.eq.s32.totalorder %s18, 0
      %p55 = por %p53, %p54
      %p56 = scmp.ne.s32.totalorder %s42, %s43
      %p57 = scmp.eq.s32.totalorder %s19, 3
      %p58 = por %p56, %p57
      %p60 = scmp.ne.s32.totalorder %s43, %s59
      %p61 = scmp.eq.s32.totalorder %s19, 0
      %p62 = por %p60, %p61
      %s63 = smul.u32 %s20, 2
      %s64 = sadd.s32 %s63, %s21
      %s65 = smul.u32 %s32, 2
      %s66 = sadd.s32 %s65, %s28
      %s67 = ssub.s32 %s64, %s66
      %p68 = scmp.eq.s32.totalorder %s67, 0
      %s70 = sadd.s32 %s69, 1
      %s71 = scalar_select %p68, %s69, %s70
      %p74 = pneg %p68
      %p75 = scmp.eq.s32.totalorder %s13, 3
      %p76 = por %p74, %p75
      %p77 = scmp.ne.s32.totalorder %s69, %s72
      %p78 = scmp.eq.s32.totalorder %s13, 0
      %p79 = por %p77, %p78
      %p80 = scmp.ne.s32.totalorder %s69, %s72
      %p81 = scmp.eq.s32.totalorder %s18, 3
      %p82 = por %p80, %p81
      %p83 = scmp.ne.s32.totalorder %s72, %s73
      %p84 = scmp.eq.s32.totalorder %s18, 0
      %p85 = por %p83, %p84
      %p86 = scmp.ne.s32.totalorder %s72, %s73
      %p87 = scmp.eq.s32.totalorder %s19, 3
      %p88 = por %p86, %p87
      %p90 = scmp.ne.s32.totalorder %s73, %s89
      %p91 = scmp.eq.s32.totalorder %s19, 0
      %p92 = por %p90, %p91
      %s94 = sadd.s32 %s93, 1
      %p97 = scmp.eq.s32.totalorder %s13, 3
      %p98 = scmp.ne.s32.totalorder %s93, %s95
      %p99 = scmp.eq.s32.totalorder %s13, 0
      %p100 = por %p98, %p99
      %p101 = scmp.ne.s32.totalorder %s93, %s95
      %p102 = scmp.eq.s32.totalorder %s18, 3
      %p103 = por %p101, %p102
      %p104 = scmp.ne.s32.totalorder %s95, %s96
      %p105 = scmp.eq.s32.totalorder %s18, 0
      %p106 = por %p104, %p105
      %p107 = scmp.ne.s32.totalorder %s95, %s96
      %p108 = scmp.eq.s32.totalorder %s19, 3
      %p109 = por %p107, %p108
      %p111 = scmp.ne.s32.totalorder %s96, %s110
      %p112 = scmp.eq.s32.totalorder %s19, 0
      %p113 = por %p111, %p112
      %s114 = ssub.s32 %s20, %s32
      %p115 = scmp.eq.s32.totalorder %s114, 0
      %s117 = sadd.s32 %s116, 1
      %s118 = scalar_select %p115, %s116, %s117
      %p121 = pneg %p115
      %p122 = scmp.eq.s32.totalorder %s13, 3
      %p123 = por %p121, %p122
      %p124 = scmp.ne.s32.totalorder %s116, %s119
      %p125 = scmp.eq.s32.totalorder %s13, 0
      %p126 = por %p124, %p125
      %p127 = scmp.ne.s32.totalorder %s116, %s119
      %p128 = scmp.eq.s32.totalorder %s18, 3
      %p129 = por %p127, %p128
      %p130 = scmp.ne.s32.totalorder %s119, %s120
      %p131 = scmp.eq.s32.totalorder %s18, 0
      %p132 = por %p130, %p131
      %p133 = scmp.ne.s32.totalorder %s119, %s120
      %p134 = scmp.eq.s32.totalorder %s19, 3
      %p135 = por %p133, %p134
      %p137 = scmp.ne.s32.totalorder %s120, %s136
      %p138 = scmp.eq.s32.totalorder %s19, 0
      %p139 = por %p137, %p138
      %p140 = scmp.le.s32.totalorder 1, %s13
      %p141 = scmp.lt.s32.totalorder %s13, 5
      %p142 = pnand %p140, %p141
      %p143 = pneg %p142
      // Predicated region
      $region9: #{tpu_custom_call.1} parent=5 // pred_check
        _
      $region10: #{tpu_custom_call.1} parent=5 // pred_check_branch
        %145 = sbr.rel (%p142) target = $region12
      $region11: #{tpu_custom_call.1} parent=5 // pred_region
        %s146 = ssub.s32 %s13, 1
        // Predicated region
        $region13: #{tpu_custom_call.1} parent=11 // pred_check
          %p147 = pneg %p106
        $region14: #{tpu_custom_call.1} parent=11 // pred_check_branch
          %149 = sbr.rel (%p147) target = $region16
        $region15: #{tpu_custom_call.1} parent=11 // pred_region
          %s151 = ssub.s32 256, 256
          %152 = vsyncadd [#allocation4], %s151
          %s153 = sshll.u32 [#allocation3], 4
          %s154 = int_to_ptr.vmem [resolvable:$true] %s153
          %159 = dma.hbm_to_vmem [thread:$0]  %s2, 256, %s154, [#allocation4], 128, 128, 8
        $region16: #{tpu_custom_call.1} parent=11 // pred_fallthru
          _
      $region12: #{tpu_custom_call.1} parent=5 // pred_fallthru
        _
      %p160 = scmp.lt.s32.totalorder %s13, 4
      // Predicated region
      $region17: #{tpu_custom_call.1} parent=5 // pred_check
        %p161 = pneg %p160
      $region18: #{tpu_custom_call.1} parent=5 // pred_check_branch
        %163 = sbr.rel (%p161) target = $region20
      $region19: #{tpu_custom_call.1} parent=5 // pred_region
        // Predicated region
        $region21: #{tpu_custom_call.1} parent=19 // pred_check
          %p164 = pneg %p49
        $region22: #{tpu_custom_call.1} parent=19 // pred_check_branch
          %166 = sbr.rel (%p164) target = $region24
        $region23: #{tpu_custom_call.1} parent=19 // pred_region
          %s167 = smul.u32 %s20, 2
          %s168 = sadd.s32 %s167, %s21
          %p169 = scmp.lt.s32.totalorder %s168, 3
          %s170 = scalar_select %p169, %s168, 3
          %s171 = smul.addr %s170, 8
          %s172 = scalar_lea.vmem %s0, %s171
          %s173 = smul.u32 %s20, 2
          %s174 = sadd.s32 %s173, %s21
        $region24: #{tpu_custom_call.1} parent=19 // pred_fallthru
          _
        // Predicated region
        $region25: #{tpu_custom_call.1} parent=19 // pred_check
          %p175 = pneg %p79
        $region26: #{tpu_custom_call.1} parent=19 // pred_check_branch
          %177 = sbr.rel (%p175) target = $region28
        $region27: #{tpu_custom_call.1} parent=19 // pred_region
          %s178 = smul.u32 %s20, 2
          %s179 = sadd.s32 %s178, %s21
          %p180 = scmp.lt.s32.totalorder %s179, 3
          %s181 = scalar_select %p180, %s179, 3
          %s182 = smul.addr %s181, 8
          %s183 = scalar_lea.vmem %s1, %s182
          %s184 = smul.u32 %s20, 2
          %s185 = sadd.s32 %s184, %s21
        $region28: #{tpu_custom_call.1} parent=19 // pred_fallthru
          _
      $region20: #{tpu_custom_call.1} parent=5 // pred_fallthru
        _
      %p186 = scmp.le.s32.totalorder 1, %s13
      %p187 = scmp.lt.s32.totalorder %s13, 5
      %p188 = pnand %p186, %p187
      %p189 = pneg %p188
      // Predicated region
      $region29: #{tpu_custom_call.1} parent=5 // pred_check
        _
      $region30: #{tpu_custom_call.1} parent=5 // pred_check_branch
        %191 = sbr.rel (%p188) target = $region32
      $region31: #{tpu_custom_call.1} parent=5 // pred_region
        %s192 = ssub.s32 %s13, 1
        // Predicated region
        $region33: #{tpu_custom_call.1} parent=31 // pred_check
          %p193 = pneg %p106
        $region34: #{tpu_custom_call.1} parent=31 // pred_check_branch
          %195 = sbr.rel (%p193) target = $region36
        $region35: #{tpu_custom_call.1} parent=31 // pred_region
          %196 = dma.done [#allocation4], 256
        $region36: #{tpu_custom_call.1} parent=31 // pred_fallthru
          _
        %s197 = smul.u32 %s22, 2
        %s198 = sadd.s32 %s197, %s23
        %p199 = scmp.lt.s32.totalorder %s198, 3
        %s200 = scalar_select %p199, %s198, 3
        %s201 = smul.addr %s200, 8
        %s202 = scalar_lea.vmem %s0, %s201
        %p203 = pneg %p55
        %p204 = pneg %p52
        %s205 = smul.u32 %s22, 2
        %s206 = sadd.s32 %s205, %s23
        %p207 = scmp.lt.s32.totalorder %s206, 3
        %s208 = scalar_select %p207, %s206, 3
        %s209 = smul.addr %s208, 8
        %s210 = scalar_lea.vmem %s1, %s209
        %p211 = pneg %p85
        %p212 = pneg %p82
        %p213 = pneg %p106
        %p214 = pneg %p103
        %p215 = pneg %p132
        %p216 = pneg %p129
        %s217 = sand.u32 %s119, 1
        %s218 = scalar_lea.sflag [#allocation5], %s217
        %s219 = sand.u32 %s119, 1
        %s220 = smul.addr %s219, 8
        %s221 = scalar_lea.vmem [#allocation6], %s220
        %s222 = smul.u32 %s22, 2
        %s223 = sadd.s32 %s222, %s23
        %p224 = scmp.lt.s32.totalorder %s223, 3
        %s225 = scalar_select %p224, %s223, 3
        %s226 = smul.addr %s225, 8
        %s227 = scalar_lea.vmem %s0, %s226
        %s228 = smul.u32 %s22, 2
        %s229 = sadd.s32 %s228, %s23
        %s230 = smul.u32 %s22, 2
        %s231 = sadd.s32 %s230, %s23
        %p232 = scmp.lt.s32.totalorder %s231, 3
        %s233 = scalar_select %p232, %s231, 3
        %s234 = smul.addr %s233, 8
        %s235 = scalar_lea.vmem %s1, %s234
        %s236 = smul.u32 %s22, 2
        %s237 = sadd.s32 %s236, %s23
        %p238 = scmp.eq.s32.totalorder %s23, 0
        // Predicated region
        $region37: #{tpu_custom_call.1} parent=31 // pred_check
          %p239 = pneg %p238
        $region38: #{tpu_custom_call.1} parent=31 // pred_check_branch
          %241 = sbr.rel (%p239) target = $region40
        $region39: #{tpu_custom_call.1} parent=31 // pred_region
          %s242 = scalar_lea.smem [#allocation2], 0
          %243 = sst [smem:[%s242]] 0.0
        $region40: #{tpu_custom_call.1} parent=31 // pred_fallthru
          _
        %v244 = vld [vmem:[%s227] sm:$0xff]
        %v245 = vld [vmem:[#allocation3] sm:$0xff]
        %v246 = vld [vmem:[#allocation3 + $0x8] sm:$0xff]
        %v247 = vld [vmem:[%s235] sm:$0xff]
        %v248 = vlaneseq
        %v249 = vand.u32 %v248, 127
        %250 = vset.pattern.permute.xlu0 0
        %251 = vperm.xlu0 %250, %v247
        %v252 = vpop.permute.xlu0 %251
        %vm253 = vcmp.eq.s32.totalorder %v252, %v249
        %v254 = vsel %vm253, 1, 0
        %v255 = vcvt.s32.f32 %v254
        %vm256 = vcmask 130048
        %v258 = vsel %vm256, %v255, 0
        %260 = vmatprep.subr.mxu0 0.0
        %261 = vmatpush1.msra.mxu0 %v245
        %262 = vmatprep.subr.mxu0 0.0
        %263 = vmatpush1.msra.mxu0 %v246
        %264 = vmatprep.subr.mxu0 0.0
        %265 = vmatpush1.msra.mxu0 0.0
        %266 = vmatprep.subr.mxu0 0.0
        %267 = vmatpush1.msra.mxu0 0.0
        %268 = vmatprep.subr.mxu0 0.0
        %269 = vmatpush1.msra.mxu0 0.0
        %270 = vmatprep.subr.mxu0 0.0
        %271 = vmatpush1.msra.mxu0 0.0
        %272 = vmatprep.subr.mxu0 0.0
        %273 = vmatpush1.msra.mxu0 0.0
        %274 = vmatprep.subr.mxu0 0.0
        %275 = vmatpush1.msra.mxu0 0.0
        %276 = vmatprep.subr.mxu0 0.0
        %277 = vmatpush1.msra.mxu0 0.0
        %278 = vmatprep.subr.mxu0 0.0
        %279 = vmatpush1.msra.mxu0 0.0
        %280 = vmatprep.subr.mxu0 0.0
        %281 = vmatpush1.msra.mxu0 0.0
        %282 = vmatprep.subr.mxu0 0.0
        %283 = vmatpush1.msra.mxu0 0.0
        %284 = vmatprep.subr.mxu0 0.0
        %285 = vmatpush1.msra.mxu0 0.0
        %286 = vmatprep.subr.mxu0 0.0
        %287 = vmatpush1.msra.mxu0 0.0
        %288 = vmatprep.subr.mxu0 0.0
        %289 = vmatpush1.msra.mxu0 0.0
        %290 = vmatprep.subr.mxu0 0.0
        %291 = vmatpush1.msra.mxu0 0.0
        %292 = vmatprep.subr.mxu0 0.0
        %293 = vmatpush1.msra.mxu0 0.0
        %294 = vmatprep.subr.mxu0 0.0
        %295 = vmatpush1.msra.mxu0 0.0
        %296 = vmatprep.subr.mxu0 0.0
        %297 = vmatpush1.msra.mxu0 0.0
        %298 = vmatprep.subr.mxu0 0.0
        %299 = vmatpush1.msra.mxu0 0.0
        %300 = vmatprep.subr.mxu0 0.0
        %301 = vmatpush1.msra.mxu0 0.0
        %302 = vmatprep.subr.mxu0 0.0
        %303 = vmatpush1.msra.mxu0 0.0
        %304 = vmatprep.subr.mxu0 0.0
        %305 = vmatpush1.msra.mxu0 0.0
        %306 = vmatprep.subr.mxu0 0.0
        %307 = vmatpush1.msra.mxu0 0.0
        %308 = vmatprep.subr.mxu0 0.0
        %309 = vmatpush1.msra.mxu0 0.0
        %310 = vmatprep.subr.mxu0 0.0
        %311 = vmatpush1.msra.mxu0 0.0
        %312 = vmatprep.subr.mxu0 0.0
        %313 = vmatpush1.msra.mxu0 0.0
        %314 = vmatprep.subr.mxu0 0.0
        %315 = vmatpush1.msra.mxu0 0.0
        %316 = vmatprep.subr.mxu0 0.0
        %317 = vmatpush1.msra.mxu0 0.0
        %318 = vmatprep.subr.mxu0 0.0
        %319 = vmatpush1.msra.mxu0 0.0
        %320 = vmatprep.subr.mxu0 0.0
        %321 = vmatpush1.msra.mxu0 0.0
        %322 = vmatprep.subr.mxu0 0.0
        %323 = vmatpush1.msra.mxu0 0.0
        %324 = vmatprep.mubr.f32.mxu0 0.0
        %325 = vmatmul.mubr.f32.gmra.mrb[0].mxu0 %v258
        %v326 = vpop.f32.mrb[0].mxu0
        %v327 = vadd.f32 0.0, %v326
        %v328 = vpop.f32.mrb[0].mxu0
        %329 = vdwg.mxu0
        %v330 = vsub.f32 %v244, %v327
        %v331 = vmul.f32 %v330, %v330
        %332 = vadd.xlane.f32.xlu0 %v331
        %v333 = vpop.xlane.xlu0 %332
        %v334 = vmax.f32 %v333, 1e-12
        %v335 = vmin.f32 %v334, 1e+12
        %s336 = smul.u32 %s22, 2
        %s337 = sadd.s32 %s336, %s23
        %s338 = smul.u32 %s337, 8
        %s339 = sadd.s32 %s338, 8
        %p340 = scmp.gt.s32.totalorder %s339, 24
        // Predicated region
        $region41: #{tpu_custom_call.1} parent=31 // pred_check
          %p341 = pneg %p340
        $region42: #{tpu_custom_call.1} parent=31 // pred_check_branch
          %343 = sbr.rel (%p341) target = $region44
        $region43: #{tpu_custom_call.1} parent=31 // pred_region
          %v344 = vlaneseq
          %v345 = vshrl.u32 %v344, 7
          %v346 = vstv %s338
          %v347 = vadd.s32 %v346, %v345
          %vm348 = vcmp.lt.s32.totalorder %v347, 24
          %v349 = vsel %vm348, 1, 0
          %v350 = vcvt.s32.f32 %v349
          %s351 = sld [smem:[#allocation2]]
          %v352 = vmul.f32 %v335, %v350
          %vm353 = vcmask 7168
          %v354 = vsel %vm353, %v352, 0.0
          %355 = vadd.xlane.f32.xlu0 %v354
          %v356 = vpop.xlane.xlu0 %355
          %v357 = vrot.slane %v356, 4
          %v358 = vadd.f32 %v356, %v357
          %v359 = vrot.slane %v358, 2
          %v360 = vadd.f32 %v358, %v359
          %v361 = vrot.slane %v360, 1
          %v362 = vadd.f32 %v360, %v361
          %s363 = vtos %v362
          %s364 = sadd.f32 %s351, %s363
          %s365 = scalar_lea.smem [#allocation2], 0
          %366 = sst [smem:[%s365]] %s364
        $region44: #{tpu_custom_call.1} parent=31 // pred_fallthru
          _
        %p367 = scmp.le.s32.totalorder %s339, 24
        // Predicated region
        $region45: #{tpu_custom_call.1} parent=31 // pred_check
          %p368 = pneg %p367
        $region46: #{tpu_custom_call.1} parent=31 // pred_check_branch
          %370 = sbr.rel (%p368) target = $region48
        $region47: #{tpu_custom_call.1} parent=31 // pred_region
          %s371 = sld [smem:[#allocation2]]
          %vm372 = vcmask 7168
          %v373 = vsel %vm372, %v335, 0.0
          %374 = vadd.xlane.f32.xlu0 %v373
          %v375 = vpop.xlane.xlu0 %374
          %v376 = vrot.slane %v375, 4
          %v377 = vadd.f32 %v375, %v376
          %v378 = vrot.slane %v377, 2
          %v379 = vadd.f32 %v377, %v378
          %v380 = vrot.slane %v379, 1
          %v381 = vadd.f32 %v379, %v380
          %s382 = vtos %v381
          %s383 = sadd.f32 %s371, %s382
          %s384 = scalar_lea.smem [#allocation2], 0
          %385 = sst [smem:[%s384]] %s383
        $region48: #{tpu_custom_call.1} parent=31 // pred_fallthru
          _
        %p386 = scmp.eq.s32.totalorder %s23, 1
        // Predicated region
        $region49: #{tpu_custom_call.1} parent=31 // pred_check
          %p387 = pneg %p386
        $region50: #{tpu_custom_call.1} parent=31 // pred_check_branch
          %389 = sbr.rel (%p387) target = $region52
        $region51: #{tpu_custom_call.1} parent=31 // pred_region
          %s390 = sld [smem:[#allocation2]]
          %v391 = vstv %s390
          %392 = vst [vmem:[%s221] sm:$0xff] %v391
        $region52: #{tpu_custom_call.1} parent=31 // pred_fallthru
          _
        %s393 = sand.u32 %s119, 1
        %s394 = scalar_lea.sflag [#allocation5], %s393
        %s395 = sand.u32 %s119, 1
        %s396 = smul.addr %s395, 8
        %s397 = scalar_lea.vmem [#allocation6], %s396
        // Predicated region
        $region53: #{tpu_custom_call.1} parent=31 // pred_check
          %p398 = pneg %p129
        $region54: #{tpu_custom_call.1} parent=31 // pred_check_branch
          %400 = sbr.rel (%p398) target = $region56
        $region55: #{tpu_custom_call.1} parent=31 // pred_region
          %s402 = ssub.s32 128, 128
          %403 = vsyncadd %s394, %s402
          %s404 = smul.addr %s22, 128
          %s405 = scalar_lea.hbm %s3, %s404
          %s407 = sshll.u32 %s397, 4
          %s408 = int_to_ptr.vmem [resolvable:$true] %s407
          %410 = dma.vmem_to_hbm [thread:$0]  %s408, 128, %s405, %s394
        $region56: #{tpu_custom_call.1} parent=31 // pred_fallthru
          _
      $region32: #{tpu_custom_call.1} parent=5 // pred_fallthru
        _
      %p411 = scmp.le.s32.totalorder 2, %s13
      // Predicated region
      $region57: #{tpu_custom_call.1} parent=5 // pred_check
        %p412 = pneg %p411
      $region58: #{tpu_custom_call.1} parent=5 // pred_check_branch
        %414 = sbr.rel (%p412) target = $region60
      $region59: #{tpu_custom_call.1} parent=5 // pred_region
        %s415 = ssub.s32 %s13, 2
        // Predicated region
        $region61: #{tpu_custom_call.1} parent=59 // pred_check
          %p416 = pneg %p135
        $region62: #{tpu_custom_call.1} parent=59 // pred_check_branch
          %418 = sbr.rel (%p416) target = $region64
        $region63: #{tpu_custom_call.1} parent=59 // pred_region
          %s419 = sand.u32 %s120, 1
          %s420 = scalar_lea.sflag [#allocation5], %s419
          %s421 = sand.u32 %s120, 1
          %s422 = smul.addr %s421, 8
          %s423 = scalar_lea.vmem [#allocation6], %s422
          %424 = dma.done %s420, 128
        $region64: #{tpu_custom_call.1} parent=59 // pred_fallthru
          _
      $region60: #{tpu_custom_call.1} parent=5 // pred_fallthru
        _
    $region6: #{tpu_custom_call.1} parent=1 // loop_footer
      %s17 = sadd.s32 1, %s13
    $region7: #{tpu_custom_call.1} parent=1 // loop_footer_branch
      %12 = sbr.rel target = $region3
    $region8: #{tpu_custom_call.1} parent=1 // loop_exit
      _
    %425 = vsyncpa [#allocation4], 1
    %s426 = scalar_lea.sflag [#allocation4], 1
    %427 = vsyncpa %s426, 1
    %428 = vsyncpa [#allocation5], 1
    %s429 = scalar_lea.sflag [#allocation5], 1
    %430 = vsyncpa %s429, 1

</llo_original>
